<compile_context>
chip_gen: v7x
topology: tpu7x:2x2x1
jax: 0.10.0
libtpu: 0.0.40
codegen_flags: <defaults>
</compile_context>

<pallas_src>
import functools

import numpy as np
import jax
import jax.numpy as jnp
from jax.experimental import pallas as pl
from jax.experimental.pallas import tpu as pltpu

LEAKY_SLOPE = 0.01


# ---------------------------------------------------------------------------
# Host-side (setup-time) construction of the constant operator matrices.
# ---------------------------------------------------------------------------
def _bilinear_x2_indices(n):
    o = np.arange(2 * n, dtype=np.float64)
    src = np.maximum((o + 0.5) / 2.0 - 0.5, 0.0)       # PyTorch clamps negative src
    i0 = np.floor(src).astype(np.int32)
    i1 = np.minimum(i0 + 1, n - 1)
    w1 = (src - i0).astype(np.float32)
    return i0, i1, (1.0 - w1), w1


def _bilinear_x2_matrix(n):
    """(2n, n) matrix B such that  up = B @ x  (nn.Upsample bilinear, align_corners=False)."""
    i0, i1, w0, w1 = _bilinear_x2_indices(n)
    B = np.zeros((2 * n, n), np.float64)
    B[np.arange(2 * n), i0] += w0
    B[np.arange(2 * n), i1] += w1
    return B


def _row_ops_upsample(H, H2):
    """(3, H2, H): bilinear H-upsample + dy row shift + zero H-padding."""
    BH = _bilinear_x2_matrix(H)
    R = np.zeros((3, H2, H), np.float64)
    for dy in range(3):
        for h in range(H2):
            r = h + dy - 1
            if 0 <= r < H2:
                R[dy, h, :] = BH[r, :]
    return R


def _row_ops_shift(H2):
    """(3, H2, H2): dy row shift with zero H-padding (identity-band matrices)."""
    S = np.zeros((3, H2, H2), np.float64)
    for dy in range(3):
        for h in range(H2):
            r = h + dy - 1
            if 0 <= r < H2:
                S[dy, h, r] = 1.0
    return S


def _col_weights_conv1(w_hwio, W, W2):
    """(3, W*Cin, W2*Cout): bilinear W-upsample + W-zero-pad + conv1 taps, per dy."""
    Cin, Cout = w_hwio.shape[2], w_hwio.shape[3]
    BW = _bilinear_x2_matrix(W)                              # (W2, W)
    M = np.zeros((3, W, Cin, W2, Cout), np.float64)
    for dy in range(3):
        for dx in range(3):
            q = np.arange(W2) + dx - 1                       # upsampled input column
            valid = (q >= 0) & (q < W2)
            Bq = np.where(valid[:, None], BW[np.clip(q, 0, W2 - 1), :], 0.0)   # (W2, W)
            M[dy] += np.einsum('qw,cf->wcqf', Bq, w_hwio[dy, dx])
    return M.reshape(3, W * Cin, W2 * Cout)


def _col_weights_conv2(w_hwio, W2):
    """(3, 2*W2*Ca, W2*Cout): conv2 taps + W-zero-pad, K split over [x2 | conv1-out]."""
    Cin2, Cout = w_hwio.shape[2], w_hwio.shape[3]
    Ca = Cin2 // 2
    A = np.zeros((3, W2, Ca, W2, Cout), np.float64)          # x2 branch
    B = np.zeros((3, W2, Ca, W2, Cout), np.float64)          # conv1-output branch
    for dy in range(3):
        for dx in range(3):
            for w in range(W2):
                q = w + dx - 1
                if 0 <= q < W2:
                    A[dy, q, :, w, :] += w_hwio[dy, dx, :Ca, :]
                    B[dy, q, :, w, :] += w_hwio[dy, dx, Ca:, :]
    A = A.reshape(3, W2 * Ca, W2 * Cout)
    B = B.reshape(3, W2 * Ca, W2 * Cout)
    return np.concatenate([A, B], axis=1)                    # (3, 2*W2*Ca, W2*Cout)


# ---------------------------------------------------------------------------
# Pallas kernels
# ---------------------------------------------------------------------------
def _up_conv1_kernel(x_ref, r_ref, m_ref, b_ref, o_ref, *, th, n_out, slope):
    # x_ref: (1, H, W*Cin) f32   r_ref: (3, th, H) f32   m_ref: (3, W*Cin, W2*Cout) bf16
    x = x_ref[0].astype(jnp.bfloat16)
    acc = jnp.zeros((th, n_out), jnp.float32)
    for dy in range(3):
        rows = jnp.dot(r_ref[dy].astype(jnp.bfloat16), x,
                       preferred_element_type=jnp.float32).astype(jnp.bfloat16)
        acc = acc + jnp.dot(rows, m_ref[dy], preferred_element_type=jnp.float32)
    acc = acc + b_ref[...]                                   # (1, W2*Cout) broadcasts
    o_ref[0] = jnp.where(acc >= 0, acc, slope * acc).astype(o_ref.dtype)


def _cat_conv2_kernel(x2_ref, y1_ref, s_ref, w_ref, b_ref, o_ref, *, th, n_out, slope):
    # Fused concat: lane-concat the two (H2, W2*C) views; K of the banded weight is
    # split accordingly, so torch.cat([x2, x1], dim=1) never materializes.
    xcat = jnp.concatenate([x2_ref[0], y1_ref[0]], axis=-1).astype(jnp.bfloat16)
    acc = jnp.zeros((th, n_out), jnp.float32)
    for dy in range(3):
        rows = jnp.dot(s_ref[dy].astype(jnp.bfloat16), xcat,
                       preferred_element_type=jnp.float32).astype(jnp.bfloat16)
        acc = acc + jnp.dot(rows, w_ref[dy], preferred_element_type=jnp.float32)
    acc = acc + b_ref[...]
    o_ref[0] = jnp.where(acc >= 0, acc, slope * acc).astype(o_ref.dtype)


def _row_tile(h2):
    return 8 if h2 % 8 == 0 else h2


# ---------------------------------------------------------------------------
# Module
# ---------------------------------------------------------------------------
class UpAndConvPallas:
    def __init__(self, in_channels, out_channels, key):
        self.cin, self.cout = in_channels, out_channels
        k1, k2, k3, k4 = jax.random.split(key, 4)
        # PyTorch Conv2d default init: U(-1/sqrt(fan_in), 1/sqrt(fan_in))
        fan1 = in_channels * 9
        b1 = 1.0 / np.sqrt(fan1)
        self.w1 = jax.random.uniform(k1, (3, 3, in_channels, out_channels),
                                     jnp.float32, -b1, b1)
        self.b1 = jax.random.uniform(k2, (out_channels,), jnp.float32, -b1, b1)
        fan2 = 2 * out_channels * 9
        b2 = 1.0 / np.sqrt(fan2)
        self.w2 = jax.random.uniform(k3, (3, 3, 2 * out_channels, out_channels),
                                     jnp.float32, -b2, b2)
        self.b2 = jax.random.uniform(k4, (out_channels,), jnp.float32, -b2, b2)
        self._plans = {}

    def _plan(self, H, W):
        """Spatial-size-dependent constant operators (built once, then cached)."""
        if (H, W) in self._plans:
            return self._plans[(H, W)]
        H2, W2 = 2 * H, 2 * W
        w1 = np.asarray(self.w1, np.float64)
        w2 = np.asarray(self.w2, np.float64)
        plan = dict(
            r1=jnp.asarray(_row_ops_upsample(H, H2), jnp.float32),           # (3,H2,H)
            m1=jnp.asarray(_col_weights_conv1(w1, W, W2), jnp.bfloat16),     # (3,W*Cin,W2*Co)
            s2=jnp.asarray(_row_ops_shift(H2), jnp.float32),                 # (3,H2,H2)
            w2band=jnp.asarray(_col_weights_conv2(w2, W2), jnp.bfloat16),    # (3,2*W2*Co,W2*Co)
            bias1=jnp.asarray(np.tile(np.asarray(self.b1, np.float64), W2)[None, :],
                              jnp.float32),                                  # (1,W2*Co)
            bias2=jnp.asarray(np.tile(np.asarray(self.b2, np.float64), W2)[None, :],
                              jnp.float32),
        )
        self._plans[(H, W)] = plan
        return plan

    def __call__(self, x1_nchw, x2_nchw):
        N, Cin, H, W = x1_nchw.shape
        H2, W2 = 2 * H, 2 * W
        Cout = self.cout
        plan = self._plan(H, W)

        # NCHW -> lane-dense channel-minor (N, H, W*C) views (layout boundary only).
        x1v = jnp.transpose(x1_nchw, (0, 2, 3, 1)).reshape(N, H, W * Cin)
        x2v = jnp.transpose(x2_nchw, (0, 2, 3, 1)).reshape(N, H2, W2 * Cout)

        th = _row_tile(H2)
        T = H2 // th
        nw = W2 * Cout
        cparams = pltpu.CompilerParams(dimension_semantics=("parallel", "parallel"))

        # --- kernel A: fused bilinear x2 upsample + conv1 + LeakyReLU ------------
        y1v = pl.pallas_call(
            functools.partial(_up_conv1_kernel, th=th, n_out=nw, slope=LEAKY_SLOPE),
            out_shape=jax.ShapeDtypeStruct((N, H2, nw), jnp.float32),
            grid=(N, T),
            in_specs=[
                pl.BlockSpec((1, H, W * Cin), lambda n, t: (n, 0, 0)),
                pl.BlockSpec((3, th, H), lambda n, t: (0, t, 0)),
                pl.BlockSpec((3, W * Cin, nw), lambda n, t: (0, 0, 0)),
                pl.BlockSpec((1, nw), lambda n, t: (0, 0)),
            ],
            out_specs=pl.BlockSpec((1, th, nw), lambda n, t: (n, t, 0)),
            compiler_params=cparams,
        )(x1v, plan["r1"], plan["m1"], plan["bias1"])

        # --- kernel B: fused concat + conv2 + LeakyReLU --------------------------
        outv = pl.pallas_call(
            functools.partial(_cat_conv2_kernel, th=th, n_out=nw, slope=LEAKY_SLOPE),
            out_shape=jax.ShapeDtypeStruct((N, H2, nw), jnp.float32),
            grid=(N, T),
            in_specs=[
                pl.BlockSpec((1, H2, nw), lambda n, t: (n, 0, 0)),
                pl.BlockSpec((1, H2, nw), lambda n, t: (n, 0, 0)),
                pl.BlockSpec((3, th, H2), lambda n, t: (0, t, 0)),
                pl.BlockSpec((3, 2 * nw, nw), lambda n, t: (0, 0, 0)),
                pl.BlockSpec((1, nw), lambda n, t: (0, 0)),
            ],
            out_specs=pl.BlockSpec((1, th, nw), lambda n, t: (n, t, 0)),
            compiler_params=cparams,
        )(x2v, y1v, plan["s2"], plan["w2band"], plan["bias2"])

        # back to NCHW
        return jnp.transpose(outv.reshape(N, H2, W2, Cout), (0, 3, 1, 2))

    # pure-JAX reference (exact f32) for the correctness check
    def reference(self, x1_nchw, x2_nchw):
        def up(x):
            _, H, W, _ = x.shape
            hi0, hi1, hw0, hw1 = _bilinear_x2_indices(H)
            wi0, wi1, ww0, ww1 = _bilinear_x2_indices(W)
            rows = (x[:, hi0] * hw0[None, :, None, None]
                    + x[:, hi1] * hw1[None, :, None, None])
            return (rows[:, :, wi0] * ww0[None, None, :, None]
                    + rows[:, :, wi1] * ww1[None, None, :, None])

        def conv(x, w, b):
            y = jax.lax.conv_general_dilated(
                x, w, (1, 1), [(1, 1), (1, 1)],
                dimension_numbers=("NHWC", "HWIO", "NHWC"),
                precision=jax.lax.Precision.HIGHEST)
            y = y + b[None, None, None, :]
            return jnp.where(y >= 0, y, LEAKY_SLOPE * y)

        x1 = jnp.transpose(x1_nchw, (0, 2, 3, 1))
        x2 = jnp.transpose(x2_nchw, (0, 2, 3, 1))
        y1 = conv(up(x1), self.w1, self.b1)
        x = jnp.concatenate([x2, y1], axis=-1)        # torch.cat([x2, x1], dim=1)
        return jnp.transpose(conv(x, self.w2, self.b2), (0, 3, 1, 2))


if __name__ == "__main__":
    key = jax.random.PRNGKey(0)
    kx1, kx2, kp = jax.random.split(key, 3)
    in_ch, out_ch = 4, 8
    N, H, W = 2, 16, 16

    x1 = jax.random.normal(kx1, (N, in_ch, H, W), jnp.float32)            # NCHW
    x2 = jax.random.normal(kx2, (N, out_ch, 2 * H, 2 * W), jnp.float32)   # NCHW

    mod = UpAndConvPallas(in_ch, out_ch, kp)
    out = jax.block_until_ready(mod(x1, x2))
    assert out.shape == (N, out_ch, 2 * H, 2 * W), out.shape

    ref = jax.block_until_ready(mod.reference(x1, x2))
    max_err = float(jnp.max(jnp.abs(out - ref)))
    assert jnp.allclose(out, ref, atol=5e-2, rtol=5e-2), max_err

    print("KERNEL_OK")
</pallas_src>

<mosaic_0001>
module attributes {stable_mosaic.version = 11 : i64} {
  func.func @_up_conv1_kernel(%arg0: i32, %arg1: i32, %arg2: memref<1x16x64xf32, #tpu.memory_space<vmem>>, %arg3: memref<3x8x16xf32, #tpu.memory_space<vmem>>, %arg4: memref<3x64x256xbf16, #tpu.memory_space<vmem>>, %arg5: memref<1x256xf32, #tpu.memory_space<vmem>>, %arg6: memref<1x8x256xf32, #tpu.memory_space<vmem>>) attributes {dimension_semantics = [#tpu.dimension_semantics<parallel>, #tpu.dimension_semantics<parallel>], iteration_bounds = array<i64: 2, 4>, scalar_prefetch = 0 : i64, scratch_operands = 0 : i64, tpu.core_type = #tpu.core_type<tc>, window_params = [{transform_indices = @transform_0, window_bounds = array<i64: 1, 16, 64>}, {transform_indices = @transform_1, window_bounds = array<i64: 3, 8, 16>}, {pipeline_mode = #tpu.pipeline_mode<synchronous>, transform_indices = @transform_2, window_bounds = array<i64: 3, 64, 256>}, {pipeline_mode = #tpu.pipeline_mode<synchronous>, transform_indices = @transform_3, window_bounds = array<i64: 1, 256>}, {transform_indices = @transform_4, window_bounds = array<i64: 1, 8, 256>}]} {
    %c0 = arith.constant 0 : index
    %c0_0 = arith.constant 0 : index
    %c0_1 = arith.constant 0 : index
    %0 = vector.load %arg2[%c0, %c0_0, %c0_1] : memref<1x16x64xf32, #tpu.memory_space<vmem>>, vector<1x16x64xf32>
    %1 = vector.shape_cast %0 : vector<1x16x64xf32> to vector<16x64xf32>
    %2 = arith.truncf %1 : vector<16x64xf32> to vector<16x64xbf16>
    %cst = arith.constant 0.000000e+00 : f32
    %3 = vector.broadcast %cst : f32 to vector<8x256xf32>
    %c0_2 = arith.constant 0 : index
    %c0_3 = arith.constant 0 : index
    %c0_4 = arith.constant 0 : index
    %4 = vector.load %arg3[%c0_2, %c0_3, %c0_4] : memref<3x8x16xf32, #tpu.memory_space<vmem>>, vector<1x8x16xf32>
    %5 = vector.shape_cast %4 : vector<1x8x16xf32> to vector<8x16xf32>
    %6 = arith.truncf %5 : vector<8x16xf32> to vector<8x16xbf16>
    %cst_5 = arith.constant dense<0.000000e+00> : vector<8x64xf32>
    %7 = tpu.matmul %6, %2, %cst_5 {dimension_numbers = #tpu.dot_dimension_numbers<[1], [0], [0], [1], [0, 0, 1, 1], [], []>} : vector<8x16xbf16>, vector<16x64xbf16>, vector<8x64xf32> -> vector<8x64xf32>
    %8 = arith.truncf %7 : vector<8x64xf32> to vector<8x64xbf16>
    %c0_6 = arith.constant 0 : index
    %c0_7 = arith.constant 0 : index
    %c0_8 = arith.constant 0 : index
    %9 = vector.load %arg4[%c0_6, %c0_7, %c0_8] : memref<3x64x256xbf16, #tpu.memory_space<vmem>>, vector<1x64x256xbf16>
    %10 = vector.shape_cast %9 : vector<1x64x256xbf16> to vector<64x256xbf16>
    %cst_9 = arith.constant dense<0.000000e+00> : vector<8x256xf32>
    %11 = tpu.matmul %8, %10, %cst_9 {dimension_numbers = #tpu.dot_dimension_numbers<[1], [0], [0], [1], [0, 0, 1, 1], [], []>} : vector<8x64xbf16>, vector<64x256xbf16>, vector<8x256xf32> -> vector<8x256xf32>
    %12 = arith.addf %3, %11 : vector<8x256xf32>
    %c1 = arith.constant 1 : index
    %c0_10 = arith.constant 0 : index
    %c0_11 = arith.constant 0 : index
    %13 = vector.load %arg3[%c1, %c0_10, %c0_11] : memref<3x8x16xf32, #tpu.memory_space<vmem>>, vector<1x8x16xf32>
    %14 = vector.shape_cast %13 : vector<1x8x16xf32> to vector<8x16xf32>
    %15 = arith.truncf %14 : vector<8x16xf32> to vector<8x16xbf16>
    %cst_12 = arith.constant dense<0.000000e+00> : vector<8x64xf32>
    %16 = tpu.matmul %15, %2, %cst_12 {dimension_numbers = #tpu.dot_dimension_numbers<[1], [0], [0], [1], [0, 0, 1, 1], [], []>} : vector<8x16xbf16>, vector<16x64xbf16>, vector<8x64xf32> -> vector<8x64xf32>
    %17 = arith.truncf %16 : vector<8x64xf32> to vector<8x64xbf16>
    %c1_13 = arith.constant 1 : index
    %c0_14 = arith.constant 0 : index
    %c0_15 = arith.constant 0 : index
    %18 = vector.load %arg4[%c1_13, %c0_14, %c0_15] : memref<3x64x256xbf16, #tpu.memory_space<vmem>>, vector<1x64x256xbf16>
    %19 = vector.shape_cast %18 : vector<1x64x256xbf16> to vector<64x256xbf16>
    %cst_16 = arith.constant dense<0.000000e+00> : vector<8x256xf32>
    %20 = tpu.matmul %17, %19, %cst_16 {dimension_numbers = #tpu.dot_dimension_numbers<[1], [0], [0], [1], [0, 0, 1, 1], [], []>} : vector<8x64xbf16>, vector<64x256xbf16>, vector<8x256xf32> -> vector<8x256xf32>
    %21 = arith.addf %12, %20 : vector<8x256xf32>
    %c2 = arith.constant 2 : index
    %c0_17 = arith.constant 0 : index
    %c0_18 = arith.constant 0 : index
    %22 = vector.load %arg3[%c2, %c0_17, %c0_18] : memref<3x8x16xf32, #tpu.memory_space<vmem>>, vector<1x8x16xf32>
    %23 = vector.shape_cast %22 : vector<1x8x16xf32> to vector<8x16xf32>
    %24 = arith.truncf %23 : vector<8x16xf32> to vector<8x16xbf16>
    %cst_19 = arith.constant dense<0.000000e+00> : vector<8x64xf32>
    %25 = tpu.matmul %24, %2, %cst_19 {dimension_numbers = #tpu.dot_dimension_numbers<[1], [0], [0], [1], [0, 0, 1, 1], [], []>} : vector<8x16xbf16>, vector<16x64xbf16>, vector<8x64xf32> -> vector<8x64xf32>
    %26 = arith.truncf %25 : vector<8x64xf32> to vector<8x64xbf16>
    %c2_20 = arith.constant 2 : index
    %c0_21 = arith.constant 0 : index
    %c0_22 = arith.constant 0 : index
    %27 = vector.load %arg4[%c2_20, %c0_21, %c0_22] : memref<3x64x256xbf16, #tpu.memory_space<vmem>>, vector<1x64x256xbf16>
    %28 = vector.shape_cast %27 : vector<1x64x256xbf16> to vector<64x256xbf16>
    %cst_23 = arith.constant dense<0.000000e+00> : vector<8x256xf32>
    %29 = tpu.matmul %26, %28, %cst_23 {dimension_numbers = #tpu.dot_dimension_numbers<[1], [0], [0], [1], [0, 0, 1, 1], [], []>} : vector<8x64xbf16>, vector<64x256xbf16>, vector<8x256xf32> -> vector<8x256xf32>
    %30 = arith.addf %21, %29 : vector<8x256xf32>
    %c0_24 = arith.constant 0 : index
    %c0_25 = arith.constant 0 : index
    %31 = vector.load %arg5[%c0_24, %c0_25] : memref<1x256xf32, #tpu.memory_space<vmem>>, vector<1x256xf32>
    %32 = vector.broadcast %31 : vector<1x256xf32> to vector<8x256xf32>
    %33 = arith.addf %30, %32 : vector<8x256xf32>
    %cst_26 = arith.constant 0.000000e+00 : f32
    %34 = vector.broadcast %cst_26 : f32 to vector<8x256xf32>
    %35 = arith.cmpf oge, %33, %34 : vector<8x256xf32>
    %cst_27 = arith.constant 0.00999999977 : f32
    %36 = vector.broadcast %cst_27 : f32 to vector<8x256xf32>
    %37 = arith.mulf %36, %33 : vector<8x256xf32>
    %38 = arith.select %35, %33, %37 : vector<8x256xi1>, vector<8x256xf32>
    %c0_28 = arith.constant 0 : index
    %c0_29 = arith.constant 0 : index
    %c0_30 = arith.constant 0 : index
    %39 = vector.load %arg6[%c0_28, %c0_29, %c0_30] : memref<1x8x256xf32, #tpu.memory_space<vmem>>, vector<1x8x256xf32>
    %40 = vector.shape_cast %39 : vector<1x8x256xf32> to vector<8x256xf32>
    %41 = vector.shape_cast %38 : vector<8x256xf32> to vector<1x8x256xf32>
    tpu.vector_store %arg6[%c0_28, %c0_29, %c0_30], %41 {strides = array<i32>} : memref<1x8x256xf32, #tpu.memory_space<vmem>>, vector<1x8x256xf32>,
    return
  }
  func.func @transform_0(%arg0: i32, %arg1: i32) -> (i32, i32, i32) {
    %c0_i32 = arith.constant 0 : i32
    %c0_i32_0 = arith.constant 0 : i32
    %c0_i32_1 = arith.constant 0 : i32
    return %arg0, %c0_i32, %c0_i32_0 : i32, i32, i32
  }
  func.func @transform_1(%arg0: i32, %arg1: i32) -> (i32, i32, i32) {
    %c0_i32 = arith.constant 0 : i32
    %c0_i32_0 = arith.constant 0 : i32
    %c0_i32_1 = arith.constant 0 : i32
    return %c0_i32, %arg1, %c0_i32_0 : i32, i32, i32
  }
  func.func @transform_2(%arg0: i32, %arg1: i32) -> (i32, i32, i32) {
    %c0_i32 = arith.constant 0 : i32
    %c0_i32_0 = arith.constant 0 : i32
    %c0_i32_1 = arith.constant 0 : i32
    %c0_i32_2 = arith.constant 0 : i32
    return %c0_i32, %c0_i32_0, %c0_i32_1 : i32, i32, i32
  }
  func.func @transform_3(%arg0: i32, %arg1: i32) -> (i32, i32) {
    %c0_i32 = arith.constant 0 : i32
    %c0_i32_0 = arith.constant 0 : i32
    %c0_i32_1 = arith.constant 0 : i32
    return %c0_i32, %c0_i32_0 : i32, i32
  }
  func.func @transform_4(%arg0: i32, %arg1: i32) -> (i32, i32, i32) {
    %c0_i32 = arith.constant 0 : i32
    %c0_i32_0 = arith.constant 0 : i32
    return %arg0, %arg1, %c0_i32 : i32, i32, i32
  }
}

</mosaic_0001>

<llo_original>
// kernel: tpu_custom_call.1
$region0: #{tpu_custom_call.1}
  #allocation0 [shape = 'u32[]', space=smem, size = 0x4, offset = 0x4, fixed_abs, tag = 'smem constant byte address 0x4 - core index']
  #allocation1 [shape = 'u32[144,128]{1,0:T(1,128)}', space=vmem, size = 0x12000, scoped, tag = 'internal scratch']
  %s0 = inlined_call_operand.vmem [shape: f32[2,16,64], index: 0, kind: input, shape index: {}]
  %s1 = inlined_call_operand.vmem [shape: f32[3,32,16], index: 1, kind: input, shape index: {}]
  %s2 = inlined_call_operand.hbm [shape: bf16[3,64,256], index: 2, kind: input, shape index: {}]
  %s3 = inlined_call_operand.vmem [shape: f32[1,256], index: 3, kind: input, shape index: {}]
  %s4 = inlined_call_operand.hbm [shape: f32[2,32,256], index: 4, kind: output, shape index: {}]
  %s5 = sld [smem:[#allocation0]]
  $region91: #{tpu_custom_call.1} parent=0
    _
  %s7 = ssub.s32 1, %s5
  %s8 = scalar_select 0, %s7, %s5
  $region1: #{tpu_custom_call.1} parent=0
    #allocation2 [shape = 'u8[24576]{0}', space=vmem, size = 0x6000, scoped, tag = 'input window, operand 1']
    #allocation3 [shape = 'u8[98304]{0}', space=vmem, size = 0x18000, scoped, tag = 'input window, operand 2, single buffered']
    #allocation4 [shape = 's32[2]{0}', space=sflag, size = 0x8, scoped, tag = 'scoped memory for tpu_custom_call.1']
    #allocation5 [shape = 's32[2]{0}', space=sflag, size = 0x8, scoped, tag = 'scoped memory for tpu_custom_call.1']
    #allocation6 [shape = 'u8[16384]{0}', space=vmem, size = 0x4000, scoped, tag = 'output window, operand 0']
    %9 = vsyncpa [#allocation4], 0
    %10 = vsyncpa [#allocation5], 0
    %s11 = scalar_lea.sflag [#allocation5], 1
    %12 = vsyncpa %s11, 0
    loop: start=0, step=1, limit=10
    $region2: #{tpu_custom_call.1} parent=1 // loop_pre_header
      _
    $region3: #{tpu_custom_call.1} parent=1 // loop_header
      %s14 = sphi 0, %s18
      %p15 = scmp.ge.s32.totalorder %s14, 10
      %s21 = sphi 0, %s33
      %s22 = sphi 0, %s29
      %s23 = sphi 0, %s21
      %s24 = sphi 0, %s22
      %s25 = sphi 0, %s23
      %s26 = sphi 0, %s24
      %s36 = sphi 0, %s38
      %s39 = sphi 0, %s36
      %s40 = sphi 0, %s39
      %s56 = sphi 0, %s40
      %s62 = sphi 0, %s64
      %s65 = sphi 0, %s62
      %s66 = sphi 0, %s65
      %s82 = sphi 0, %s66
      %s86 = sphi 0, %s86
      %s88 = sphi 0, %s86
      %s89 = sphi 0, %s88
      %s103 = sphi 0, %s89
      %s107 = sphi 0, %s107
      %s109 = sphi 0, %s107
      %s110 = sphi 0, %s109
      %s124 = sphi 0, %s110
      %s132 = sphi 0, %s134
      %s135 = sphi 0, %s132
      %s136 = sphi 0, %s135
      %s152 = sphi 0, %s136
    $region4: #{tpu_custom_call.1} parent=1 // loop_header_branch
      %17 = sbr.rel (%p15) target = $region8
    $region5: #{tpu_custom_call.1} parent=1 // loop_body
      %s19 = ssub.s32 %s14, 1
      %s20 = ssub.s32 %s14, 2
      %s27 = sadd.s32 1, %s22
      %p28 = scmp.ge.s32.totalorder %s27, 4
      %s29 = scalar_select %p28, 0, %s27
      %s30 = sadd.s32 1, %s21
      %s31 = scalar_select %p28, %s30, %s21
      %p32 = scmp.ge.s32.totalorder %s31, 2
      %s33 = scalar_select %p32, 0, %s31
      %s34 = ssub.s32 %s21, %s33
      %p35 = scmp.eq.s32.totalorder %s34, 0
      %s37 = sadd.s32 %s36, 1
      %s38 = scalar_select %p35, %s36, %s37
      %p41 = pneg %p35
      %p42 = scmp.eq.s32.totalorder %s14, 7
      %p43 = por %p41, %p42
      %p44 = scmp.ne.s32.totalorder %s36, %s39
      %p45 = scmp.eq.s32.totalorder %s14, 0
      %p46 = por %p44, %p45
      %p47 = scmp.ne.s32.totalorder %s36, %s39
      %p48 = scmp.eq.s32.totalorder %s19, 7
      %p49 = por %p47, %p48
      %p50 = scmp.ne.s32.totalorder %s39, %s40
      %p51 = scmp.eq.s32.totalorder %s19, 0
      %p52 = por %p50, %p51
      %p53 = scmp.ne.s32.totalorder %s39, %s40
      %p54 = scmp.eq.s32.totalorder %s20, 7
      %p55 = por %p53, %p54
      %p57 = scmp.ne.s32.totalorder %s40, %s56
      %p58 = scmp.eq.s32.totalorder %s20, 0
      %p59 = por %p57, %p58
      %s60 = ssub.s32 %s22, %s29
      %p61 = scmp.eq.s32.totalorder %s60, 0
      %s63 = sadd.s32 %s62, 1
      %s64 = scalar_select %p61, %s62, %s63
      %p67 = pneg %p61
      %p68 = scmp.eq.s32.totalorder %s14, 7
      %p69 = por %p67, %p68
      %p70 = scmp.ne.s32.totalorder %s62, %s65
      %p71 = scmp.eq.s32.totalorder %s14, 0
      %p72 = por %p70, %p71
      %p73 = scmp.ne.s32.totalorder %s62, %s65
      %p74 = scmp.eq.s32.totalorder %s19, 7
      %p75 = por %p73, %p74
      %p76 = scmp.ne.s32.totalorder %s65, %s66
      %p77 = scmp.eq.s32.totalorder %s19, 0
      %p78 = por %p76, %p77
      %p79 = scmp.ne.s32.totalorder %s65, %s66
      %p80 = scmp.eq.s32.totalorder %s20, 7
      %p81 = por %p79, %p80
      %p83 = scmp.ne.s32.totalorder %s66, %s82
      %p84 = scmp.eq.s32.totalorder %s20, 0
      %p85 = por %p83, %p84
      %s87 = sadd.s32 %s86, 1
      %p90 = scmp.eq.s32.totalorder %s14, 7
      %p91 = scmp.ne.s32.totalorder %s86, %s88
      %p92 = scmp.eq.s32.totalorder %s14, 0
      %p93 = por %p91, %p92
      %p94 = scmp.ne.s32.totalorder %s86, %s88
      %p95 = scmp.eq.s32.totalorder %s19, 7
      %p96 = por %p94, %p95
      %p97 = scmp.ne.s32.totalorder %s88, %s89
      %p98 = scmp.eq.s32.totalorder %s19, 0
      %p99 = por %p97, %p98
      %p100 = scmp.ne.s32.totalorder %s88, %s89
      %p101 = scmp.eq.s32.totalorder %s20, 7
      %p102 = por %p100, %p101
      %p104 = scmp.ne.s32.totalorder %s89, %s103
      %p105 = scmp.eq.s32.totalorder %s20, 0
      %p106 = por %p104, %p105
      %s108 = sadd.s32 %s107, 1
      %p111 = scmp.eq.s32.totalorder %s14, 7
      %p112 = scmp.ne.s32.totalorder %s107, %s109
      %p113 = scmp.eq.s32.totalorder %s14, 0
      %p114 = por %p112, %p113
      %p115 = scmp.ne.s32.totalorder %s107, %s109
      %p116 = scmp.eq.s32.totalorder %s19, 7
      %p117 = por %p115, %p116
      %p118 = scmp.ne.s32.totalorder %s109, %s110
      %p119 = scmp.eq.s32.totalorder %s19, 0
      %p120 = por %p118, %p119
      %p121 = scmp.ne.s32.totalorder %s109, %s110
      %p122 = scmp.eq.s32.totalorder %s20, 7
      %p123 = por %p121, %p122
      %p125 = scmp.ne.s32.totalorder %s110, %s124
      %p126 = scmp.eq.s32.totalorder %s20, 0
      %p127 = por %p125, %p126
      %s128 = ssub.s32 %s21, %s33
      %s129 = ssub.s32 %s22, %s29
      %s130 = sor.u32 %s128, %s129
      %p131 = scmp.eq.s32.totalorder %s130, 0
      %s133 = sadd.s32 %s132, 1
      %s134 = scalar_select %p131, %s132, %s133
      %p137 = pneg %p131
      %p138 = scmp.eq.s32.totalorder %s14, 7
      %p139 = por %p137, %p138
      %p140 = scmp.ne.s32.totalorder %s132, %s135
      %p141 = scmp.eq.s32.totalorder %s14, 0
      %p142 = por %p140, %p141
      %p143 = scmp.ne.s32.totalorder %s132, %s135
      %p144 = scmp.eq.s32.totalorder %s19, 7
      %p145 = por %p143, %p144
      %p146 = scmp.ne.s32.totalorder %s135, %s136
      %p147 = scmp.eq.s32.totalorder %s19, 0
      %p148 = por %p146, %p147
      %p149 = scmp.ne.s32.totalorder %s135, %s136
      %p150 = scmp.eq.s32.totalorder %s20, 7
      %p151 = por %p149, %p150
      %p153 = scmp.ne.s32.totalorder %s136, %s152
      %p154 = scmp.eq.s32.totalorder %s20, 0
      %p155 = por %p153, %p154
      %p156 = scmp.le.s32.totalorder 1, %s14
      %p157 = scmp.lt.s32.totalorder %s14, 9
      %p158 = pnand %p156, %p157
      %p159 = pneg %p158
      // Predicated region
      $region9: #{tpu_custom_call.1} parent=5 // pred_check
        _
      $region10: #{tpu_custom_call.1} parent=5 // pred_check_branch
        %161 = sbr.rel (%p158) target = $region12
      $region11: #{tpu_custom_call.1} parent=5 // pred_region
        %s162 = ssub.s32 %s14, 1
        // Predicated region
        $region13: #{tpu_custom_call.1} parent=11 // pred_check
          %p163 = pneg %p99
        $region14: #{tpu_custom_call.1} parent=11 // pred_check_branch
          %165 = sbr.rel (%p163) target = $region16
        $region15: #{tpu_custom_call.1} parent=11 // pred_region
          %s167 = ssub.s32 3072, 3072
          %168 = vsyncadd [#allocation4], %s167
          %s169 = sshll.u32 [#allocation3], 4
          %s170 = int_to_ptr.vmem [resolvable:$true] %s169
          %175 = dma.hbm_to_vmem [thread:$0]  %s2, 3072, %s170, [#allocation4], 128, 128, 8
        $region16: #{tpu_custom_call.1} parent=11 // pred_fallthru
          _
        // Predicated region
        $region17: #{tpu_custom_call.1} parent=11 // pred_check
          %p176 = pneg %p120
        $region18: #{tpu_custom_call.1} parent=11 // pred_check_branch
          %178 = sbr.rel (%p176) target = $region20
        $region19: #{tpu_custom_call.1} parent=11 // pred_region
          _
        $region20: #{tpu_custom_call.1} parent=11 // pred_fallthru
          _
      $region12: #{tpu_custom_call.1} parent=5 // pred_fallthru
        _
      %p179 = scmp.lt.s32.totalorder %s14, 8
      // Predicated region
      $region21: #{tpu_custom_call.1} parent=5 // pred_check
        %p180 = pneg %p179
      $region22: #{tpu_custom_call.1} parent=5 // pred_check_branch
        %182 = sbr.rel (%p180) target = $region24
      $region23: #{tpu_custom_call.1} parent=5 // pred_region
        // Predicated region
        $region25: #{tpu_custom_call.1} parent=23 // pred_check
          %p183 = pneg %p46
        $region26: #{tpu_custom_call.1} parent=23 // pred_check_branch
          %185 = sbr.rel (%p183) target = $region28
        $region27: #{tpu_custom_call.1} parent=23 // pred_region
          %p186 = scmp.lt.s32.totalorder %s21, 1
          %s187 = scalar_select %p186, %s21, 1
          %s188 = smul.addr %s187, 2
          %s189 = smul.addr %s188, 8
          %s190 = scalar_lea.vmem %s0, %s189
        $region28: #{tpu_custom_call.1} parent=23 // pred_fallthru
          _
        // Predicated region
        $region29: #{tpu_custom_call.1} parent=23 // pred_check
          %p191 = pneg %p72
        $region30: #{tpu_custom_call.1} parent=23 // pred_check_branch
          %193 = sbr.rel (%p191) target = $region32
        $region31: #{tpu_custom_call.1} parent=23 // pred_region
          %s194 = sand.u32 %s62, 1
          %s195 = sand.u32 %s62, 1
          %s196 = smul.addr %s195, 24
          %s197 = scalar_lea.vmem [#allocation2], %s196
          %s198 = smul.addr %s22, 8
          %s199 = scalar_lea.vmem %s1, %s198
          // Predicated region
          $region33: #{tpu_custom_call.1} parent=31 // pred_check
            _
          $region34: #{tpu_custom_call.1} parent=31 // pred_check_branch
            %201 = sbr.rel (0) target = $region36
          $region35: #{tpu_custom_call.1} parent=31 // pred_region
            // Predicated region
            $region37: #{tpu_custom_call.1} parent=35 // pred_check
              _
            $region38: #{tpu_custom_call.1} parent=35 // pred_check_branch
              %203 = sbr.rel (0) target = $region40
            $region39: #{tpu_custom_call.1} parent=35 // pred_region
              // Predicated region
              $region52: #{tpu_custom_call.1} parent=39 // pred_check
                _
              $region53: #{tpu_custom_call.1} parent=39 // pred_check_branch
                %222 = sbr.rel (0) target = $region55
              $region54: #{tpu_custom_call.1} parent=39 // pred_region
                loop: start=0, step=1, limit=1
                $region56: #{tpu_custom_call.1} parent=54 // loop_pre_header
                  _
                $region57: #{tpu_custom_call.1} parent=54 // loop_header
                  %s224 = sphi 0, %s228
                  %p225 = scmp.ge.s32.totalorder %s224, 1
                  %s229 = sphi %s199, %s199
                  %s230 = sphi %s197, %s197
                $region58: #{tpu_custom_call.1} parent=54 // loop_header_branch
                  %227 = sbr.rel (%p225) target = $region62
                $region59: #{tpu_custom_call.1} parent=54 // loop_body
                  %v231 = vld [vmem:[%s229] sm:$0xff]
                  %232 = vst [vmem:[%s230] sm:$0xff] %v231
                  %v233 = vld [vmem:[%s229 + $0x20] sm:$0xff]
                  %234 = vst [vmem:[%s230 + $0x8] sm:$0xff] %v233
                  %v235 = vld [vmem:[%s229 + $0x40] sm:$0xff]
                  %236 = vst [vmem:[%s230 + $0x10] sm:$0xff] %v235
                $region60: #{tpu_custom_call.1} parent=54 // loop_footer
                  %s228 = sadd.s32 1, %s224
                $region61: #{tpu_custom_call.1} parent=54 // loop_footer_branch
                  %223 = sbr.rel target = $region57
                $region62: #{tpu_custom_call.1} parent=54 // loop_exit
                  _
              $region55: #{tpu_custom_call.1} parent=39 // pred_fallthru
                _
              // Predicated region
              $region63: #{tpu_custom_call.1} parent=39 // pred_check
                _
              $region64: #{tpu_custom_call.1} parent=39 // pred_check_branch
                %238 = sbr.rel target = $region66
              $region65: #{tpu_custom_call.1} parent=39 // pred_region
                _
              $region66: #{tpu_custom_call.1} parent=39 // pred_fallthru
                _
            $region40: #{tpu_custom_call.1} parent=35 // pred_fallthru
              _
            // Predicated region
            $region41: #{tpu_custom_call.1} parent=35 // pred_check
              _
            $region42: #{tpu_custom_call.1} parent=35 // pred_check_branch
              %205 = sbr.rel target = $region44
            $region43: #{tpu_custom_call.1} parent=35 // pred_region
              loop: start=0, step=1, limit=1
              $region45: #{tpu_custom_call.1} parent=43 // loop_pre_header
                _
              $region46: #{tpu_custom_call.1} parent=43 // loop_header
                %s208 = sphi 0, %s212
                %p209 = scmp.ge.s32.totalorder %s208, 1
                %s213 = sphi %s199, %s199
                %s214 = sphi %s197, %s197
              $region47: #{tpu_custom_call.1} parent=43 // loop_header_branch
                %211 = sbr.rel (%p209) target = $region51
              $region48: #{tpu_custom_call.1} parent=43 // loop_body
                %v215 = vld [vmem:[%s213] sm:$0xff]
                %216 = vst [vmem:[%s214] sm:$0xff] %v215
                %v217 = vld [vmem:[%s213 + $0x20] sm:$0xff]
                %218 = vst [vmem:[%s214 + $0x8] sm:$0xff] %v217
                %v219 = vld [vmem:[%s213 + $0x40] sm:$0xff]
                %220 = vst [vmem:[%s214 + $0x10] sm:$0xff] %v219
              $region49: #{tpu_custom_call.1} parent=43 // loop_footer
                %s212 = sadd.s32 1, %s208
              $region50: #{tpu_custom_call.1} parent=43 // loop_footer_branch
                %207 = sbr.rel target = $region46
              $region51: #{tpu_custom_call.1} parent=43 // loop_exit
                _
            $region44: #{tpu_custom_call.1} parent=35 // pred_fallthru
              _
          $region36: #{tpu_custom_call.1} parent=31 // pred_fallthru
            _
          %239 = vnop
        $region32: #{tpu_custom_call.1} parent=23 // pred_fallthru
          _
      $region24: #{tpu_custom_call.1} parent=5 // pred_fallthru
        _
      %p240 = scmp.le.s32.totalorder 1, %s14
      %p241 = scmp.lt.s32.totalorder %s14, 9
      %p242 = pnand %p240, %p241
      %p243 = pneg %p242
      // Predicated region
      $region67: #{tpu_custom_call.1} parent=5 // pred_check
        _
      $region68: #{tpu_custom_call.1} parent=5 // pred_check_branch
        %245 = sbr.rel (%p242) target = $region70
      $region69: #{tpu_custom_call.1} parent=5 // pred_region
        %s246 = ssub.s32 %s14, 1
        %s247 = sand.u32 %s65, 1
        %s248 = sand.u32 %s65, 1
        %s249 = smul.addr %s248, 24
        %s250 = scalar_lea.vmem [#allocation2], %s249
        // Predicated region
        $region71: #{tpu_custom_call.1} parent=69 // pred_check
          %p251 = pneg %p78
        $region72: #{tpu_custom_call.1} parent=69 // pred_check_branch
          %253 = sbr.rel (%p251) target = $region74
        $region73: #{tpu_custom_call.1} parent=69 // pred_region
          _
        $region74: #{tpu_custom_call.1} parent=69 // pred_fallthru
          _
        // Predicated region
        $region75: #{tpu_custom_call.1} parent=69 // pred_check
          %p254 = pneg %p99
        $region76: #{tpu_custom_call.1} parent=69 // pred_check_branch
          %256 = sbr.rel (%p254) target = $region78
        $region77: #{tpu_custom_call.1} parent=69 // pred_region
          %257 = dma.done [#allocation4], 3072
        $region78: #{tpu_custom_call.1} parent=69 // pred_fallthru
          _
        %p258 = scmp.lt.s32.totalorder %s23, 1
        %s259 = scalar_select %p258, %s23, 1
        %s260 = smul.addr %s259, 2
        %s261 = smul.addr %s260, 8
        %s262 = scalar_lea.vmem %s0, %s261
        %p263 = pneg %p52
        %p264 = pneg %p49
        %s265 = sand.u32 %s65, 1
        %s266 = sand.u32 %s65, 1
        %s267 = smul.addr %s266, 24
        %s268 = scalar_lea.vmem [#allocation2], %s267
        %p269 = pneg %p78
        %p270 = pneg %p75
        %p271 = pneg %p99
        %p272 = pneg %p96
        %p273 = pneg %p120
        %p274 = pneg %p117
        %p275 = pneg %p148
        %p276 = pneg %p145
        %s277 = sand.u32 %s135, 1
        %s278 = scalar_lea.sflag [#allocation5], %s277
        %s279 = sand.u32 %s135, 1
        %s280 = smul.addr %s279, 16
        %s281 = scalar_lea.vmem [#allocation6], %s280
        %p282 = scmp.lt.s32.totalorder %s23, 1
        %s283 = scalar_select %p282, %s23, 1
        %s284 = smul.addr %s283, 2
        %s285 = smul.addr %s284, 8
        %s286 = scalar_lea.vmem %s0, %s285
        %v288 = vld [vmem:[%s286] sm:$0xff]
        %v289 = vld [vmem:[%s286 + $0x8] sm:$0xff]
        %v290 = vpack.c.bf16 %v289, %v288
        %v291 = vld [vmem:[%s250] sm:$0xff]
        %v292 = vpack.c.bf16 %v291, %v291
        %vm293 = vcmask 130048
        %v295 = vsel %vm293, %v292, 0
        %297 = vmatprep.subr.bf16.mxu0 0
        %298 = vmatpush1.bf16.msra.mxu0 %v290
        %299 = vmatprep.subr.bf16.mxu0 0
        %300 = vmatpush1.bf16.msra.mxu0 0
        %301 = vmatprep.subr.bf16.mxu0 0
        %302 = vmatpush1.bf16.msra.mxu0 0
        %303 = vmatprep.subr.bf16.mxu0 0
        %304 = vmatpush1.bf16.msra.mxu0 0
        %305 = vmatprep.subr.bf16.mxu0 0
        %306 = vmatpush1.bf16.msra.mxu0 0
        %307 = vmatprep.subr.bf16.mxu0 0
        %308 = vmatpush1.bf16.msra.mxu0 0
        %309 = vmatprep.subr.bf16.mxu0 0
        %310 = vmatpush1.bf16.msra.mxu0 0
        %311 = vmatprep.subr.bf16.mxu0 0
        %312 = vmatpush1.bf16.msra.mxu0 0
        %313 = vmatprep.subr.bf16.mxu0 0
        %314 = vmatpush1.bf16.msra.mxu0 0
        %315 = vmatprep.subr.bf16.mxu0 0
        %316 = vmatpush1.bf16.msra.mxu0 0
        %317 = vmatprep.subr.bf16.mxu0 0
        %318 = vmatpush1.bf16.msra.mxu0 0
        %319 = vmatprep.subr.bf16.mxu0 0
        %320 = vmatpush1.bf16.msra.mxu0 0
        %321 = vmatprep.subr.bf16.mxu0 0
        %322 = vmatpush1.bf16.msra.mxu0 0
        %323 = vmatprep.subr.bf16.mxu0 0
        %324 = vmatpush1.bf16.msra.mxu0 0
        %325 = vmatprep.subr.bf16.mxu0 0
        %326 = vmatpush1.bf16.msra.mxu0 0
        %327 = vmatprep.subr.bf16.mxu0 0
        %328 = vmatpush1.bf16.msra.mxu0 0
        %329 = vmatprep.mubr.bf16.mxu0 0
        %330 = vmatmul.mubr.bf16.gmra.mrb[0].mxu0 %v295
        %v331 = vpop.f32.mrb[0].mxu0
        %v332 = vadd.f32 0.0, %v331
        %v333 = vpop.f32.mrb[0].mxu0
        %v334 = vpop.f32.mrb[0].mxu0
        %v335 = vpop.f32.mrb[0].mxu0
        %336 = vdwg.mxu0
        %v337 = vpack.c.bf16 %v332, %v332
        %v338 = vld [vmem:[#allocation3] sm:$0xff]
        %v339 = vld [vmem:[#allocation3 + $0x8] sm:$0xff]
        %v340 = vld [vmem:[#allocation3 + $0x10] sm:$0xff]
        %v341 = vld [vmem:[#allocation3 + $0x18] sm:$0xff]
        %v342 = vld [vmem:[#allocation3 + $0x20] sm:$0xff]
        %v343 = vld [vmem:[#allocation3 + $0x28] sm:$0xff]
        %v344 = vld [vmem:[#allocation3 + $0x30] sm:$0xff]
        %v345 = vld [vmem:[#allocation3 + $0x38] sm:$0xff]
        %s346 = scalar_lea.vmem %s250, 8 [#allocation2]
        %v347 = vld [vmem:[%s346] sm:$0xff]
        %v348 = vpack.c.bf16 %v347, %v347
        %v350 = vsel %vm293, %v348, 0
        %352 = vmatprep.subr.bf16.mxu0 0
        %353 = vmatpush1.bf16.msra.mxu0 %v290
        %354 = vmatprep.subr.bf16.mxu0 0
        %355 = vmatpush1.bf16.msra.mxu0 0
        %356 = vmatprep.subr.bf16.mxu0 0
        %357 = vmatpush1.bf16.msra.mxu0 0
        %358 = vmatprep.subr.bf16.mxu0 0
        %359 = vmatpush1.bf16.msra.mxu0 0
        %360 = vmatprep.subr.bf16.mxu0 0
        %361 = vmatpush1.bf16.msra.mxu0 0
        %362 = vmatprep.subr.bf16.mxu0 0
        %363 = vmatpush1.bf16.msra.mxu0 0
        %364 = vmatprep.subr.bf16.mxu0 0
        %365 = vmatpush1.bf16.msra.mxu0 0
        %366 = vmatprep.subr.bf16.mxu0 0
        %367 = vmatpush1.bf16.msra.mxu0 0
        %368 = vmatprep.subr.bf16.mxu0 0
        %369 = vmatpush1.bf16.msra.mxu0 0
        %370 = vmatprep.subr.bf16.mxu0 0
        %371 = vmatpush1.bf16.msra.mxu0 0
        %372 = vmatprep.subr.bf16.mxu0 0
        %373 = vmatpush1.bf16.msra.mxu0 0
        %374 = vmatprep.subr.bf16.mxu0 0
        %375 = vmatpush1.bf16.msra.mxu0 0
        %376 = vmatprep.subr.bf16.mxu0 0
        %377 = vmatpush1.bf16.msra.mxu0 0
        %378 = vmatprep.subr.bf16.mxu0 0
        %379 = vmatpush1.bf16.msra.mxu0 0
        %380 = vmatprep.subr.bf16.mxu0 0
        %381 = vmatpush1.bf16.msra.mxu0 0
        %382 = vmatprep.subr.bf16.mxu0 0
        %383 = vmatpush1.bf16.msra.mxu0 0
        %384 = vmatprep.mubr.bf16.mxu0 0
        %385 = vmatmul.mubr.bf16.gmra.mrb[0].mxu0 %v350
        %v386 = vpop.f32.mrb[0].mxu0
        %v387 = vadd.f32 0.0, %v386
        %v388 = vpop.f32.mrb[0].mxu0
        %v389 = vpop.f32.mrb[0].mxu0
        %v390 = vpop.f32.mrb[0].mxu0
        %391 = vdwg.mxu0
        %v392 = vpack.c.bf16 %v387, %v387
        %s393 = scalar_lea.vmem [#allocation3], 64
        %v394 = vld [vmem:[%s393] sm:$0xff]
        %v395 = vld [vmem:[%s393 + $0x8] sm:$0xff]
        %v396 = vld [vmem:[%s393 + $0x10] sm:$0xff]
        %v397 = vld [vmem:[%s393 + $0x18] sm:$0xff]
        %v398 = vld [vmem:[%s393 + $0x20] sm:$0xff]
        %v399 = vld [vmem:[%s393 + $0x28] sm:$0xff]
        %v400 = vld [vmem:[%s393 + $0x30] sm:$0xff]
        %v401 = vld [vmem:[%s393 + $0x38] sm:$0xff]
        %v410 = vunpack.c.l.b16 %v394
        %v411 = vunpack.c.h.b16 %v394
        %v412 = vunpack.c.l.b16 %v395
        %v413 = vunpack.c.h.b16 %v395
        %v414 = vunpack.c.l.b16 %v396
        %v415 = vunpack.c.h.b16 %v396
        %v416 = vunpack.c.l.b16 %v397
        %v417 = vunpack.c.h.b16 %v397
        %v418 = vunpack.c.l.b16 %v398
        %v419 = vunpack.c.h.b16 %v398
        %v420 = vunpack.c.l.b16 %v399
        %v421 = vunpack.c.h.b16 %v399
        %v422 = vunpack.c.l.b16 %v400
        %v423 = vunpack.c.h.b16 %v400
        %v424 = vunpack.c.l.b16 %v401
        %v425 = vunpack.c.h.b16 %v401
        %v426 = vpack.c.b16 %v412, %v410
        %v427 = vpack.c.b16 %v413, %v411
        %v428 = vpack.c.b16 %v416, %v414
        %v429 = vpack.c.b16 %v417, %v415
        %v430 = vpack.c.b16 %v420, %v418
        %v431 = vpack.c.b16 %v421, %v419
        %v432 = vpack.c.b16 %v424, %v422
        %v433 = vpack.c.b16 %v425, %v423
        %vm442 = vcmask 523264
        %v444 = vsel %vm442, %v392, 0
        %446 = vmatprep.subr.bf16.mxu0 %v427
        %447 = vmatpush1.bf16.msra.mxu0 %v426
        %448 = vmatprep.subr.bf16.mxu0 %v429
        %449 = vmatpush1.bf16.msra.mxu0 %v428
        %450 = vmatprep.subr.bf16.mxu0 %v431
        %451 = vmatpush1.bf16.msra.mxu0 %v430
        %452 = vmatprep.subr.bf16.mxu0 %v433
        %453 = vmatpush1.bf16.msra.mxu0 %v432
        %454 = vmatprep.subr.bf16.mxu0 0
        %455 = vmatpush1.bf16.msra.mxu0 0
        %456 = vmatprep.subr.bf16.mxu0 0
        %457 = vmatpush1.bf16.msra.mxu0 0
        %458 = vmatprep.subr.bf16.mxu0 0
        %459 = vmatpush1.bf16.msra.mxu0 0
        %460 = vmatprep.subr.bf16.mxu0 0
        %461 = vmatpush1.bf16.msra.mxu0 0
        %462 = vmatprep.subr.bf16.mxu0 0
        %463 = vmatpush1.bf16.msra.mxu0 0
        %464 = vmatprep.subr.bf16.mxu0 0
        %465 = vmatpush1.bf16.msra.mxu0 0
        %466 = vmatprep.subr.bf16.mxu0 0
        %467 = vmatpush1.bf16.msra.mxu0 0
        %468 = vmatprep.subr.bf16.mxu0 0
        %469 = vmatpush1.bf16.msra.mxu0 0
        %470 = vmatprep.subr.bf16.mxu0 0
        %471 = vmatpush1.bf16.msra.mxu0 0
        %472 = vmatprep.subr.bf16.mxu0 0
        %473 = vmatpush1.bf16.msra.mxu0 0
        %474 = vmatprep.subr.bf16.mxu0 0
        %475 = vmatpush1.bf16.msra.mxu0 0
        %476 = vmatprep.subr.bf16.mxu0 0
        %477 = vmatpush1.bf16.msra.mxu0 0
        %478 = vmatprep.mubr.bf16.mxu0 0
        %479 = vmatmul.mubr.bf16.gmra.mrb[0].mxu0 %v444
        %v480 = vpop.f32.mrb[0].mxu0
        %v481 = vadd.f32 0.0, %v480
        %v482 = vpop.f32.mrb[0].mxu0
        %v483 = vadd.f32 0.0, %v482
        %v484 = vpop.f32.mrb[0].mxu0
        %v485 = vpop.f32.mrb[0].mxu0
        %486 = vdwg.mxu0
        %v495 = vunpack.c.l.b16 %v338
        %v496 = vunpack.c.h.b16 %v338
        %v497 = vunpack.c.l.b16 %v339
        %v498 = vunpack.c.h.b16 %v339
        %v499 = vunpack.c.l.b16 %v340
        %v500 = vunpack.c.h.b16 %v340
        %v501 = vunpack.c.l.b16 %v341
        %v502 = vunpack.c.h.b16 %v341
        %v503 = vunpack.c.l.b16 %v342
        %v504 = vunpack.c.h.b16 %v342
        %v505 = vunpack.c.l.b16 %v343
        %v506 = vunpack.c.h.b16 %v343
        %v507 = vunpack.c.l.b16 %v344
        %v508 = vunpack.c.h.b16 %v344
        %v509 = vunpack.c.l.b16 %v345
        %v510 = vunpack.c.h.b16 %v345
        %v511 = vpack.c.b16 %v497, %v495
        %v512 = vpack.c.b16 %v498, %v496
        %v513 = vpack.c.b16 %v501, %v499
        %v514 = vpack.c.b16 %v502, %v500
        %v515 = vpack.c.b16 %v505, %v503
        %v516 = vpack.c.b16 %v506, %v504
        %v517 = vpack.c.b16 %v509, %v507
        %v518 = vpack.c.b16 %v510, %v508
        %v528 = vsel %vm442, %v337, 0
        %530 = vmatprep.subr.bf16.mxu0 %v512
        %531 = vmatpush1.bf16.msra.mxu0 %v511
        %532 = vmatprep.subr.bf16.mxu0 %v514
        %533 = vmatpush1.bf16.msra.mxu0 %v513
        %534 = vmatprep.subr.bf16.mxu0 %v516
        %535 = vmatpush1.bf16.msra.mxu0 %v515
        %536 = vmatprep.subr.bf16.mxu0 %v518
        %537 = vmatpush1.bf16.msra.mxu0 %v517
        %538 = vmatprep.subr.bf16.mxu0 0
        %539 = vmatpush1.bf16.msra.mxu0 0
        %540 = vmatprep.subr.bf16.mxu0 0
        %541 = vmatpush1.bf16.msra.mxu0 0
        %542 = vmatprep.subr.bf16.mxu0 0
        %543 = vmatpush1.bf16.msra.mxu0 0
        %544 = vmatprep.subr.bf16.mxu0 0
        %545 = vmatpush1.bf16.msra.mxu0 0
        %546 = vmatprep.subr.bf16.mxu0 0
        %547 = vmatpush1.bf16.msra.mxu0 0
        %548 = vmatprep.subr.bf16.mxu0 0
        %549 = vmatpush1.bf16.msra.mxu0 0
        %550 = vmatprep.subr.bf16.mxu0 0
        %551 = vmatpush1.bf16.msra.mxu0 0
        %552 = vmatprep.subr.bf16.mxu0 0
        %553 = vmatpush1.bf16.msra.mxu0 0
        %554 = vmatprep.subr.bf16.mxu0 0
        %555 = vmatpush1.bf16.msra.mxu0 0
        %556 = vmatprep.subr.bf16.mxu0 0
        %557 = vmatpush1.bf16.msra.mxu0 0
        %558 = vmatprep.subr.bf16.mxu0 0
        %559 = vmatpush1.bf16.msra.mxu0 0
        %560 = vmatprep.subr.bf16.mxu0 0
        %561 = vmatpush1.bf16.msra.mxu0 0
        %562 = vmatprep.mubr.bf16.mxu0 0
        %563 = vmatmul.mubr.bf16.gmra.mrb[0].mxu0 %v528
        %v564 = vpop.f32.mrb[0].mxu0
        %v565 = vadd.f32 %v481, %v564
        %v566 = vpop.f32.mrb[0].mxu0
        %v567 = vadd.f32 %v483, %v566
        %v568 = vpop.f32.mrb[0].mxu0
        %v569 = vpop.f32.mrb[0].mxu0
        %570 = vdwg.mxu0
        %s571 = scalar_lea.vmem %s250, 16 [#allocation2]
        %v572 = vld [vmem:[%s571] sm:$0xff]
        %v573 = vpack.c.bf16 %v572, %v572
        %v575 = vsel %vm293, %v573, 0
        %577 = vmatprep.subr.bf16.mxu0 0
        %578 = vmatpush1.bf16.msra.mxu0 %v290
        %579 = vmatprep.subr.bf16.mxu0 0
        %580 = vmatpush1.bf16.msra.mxu0 0
        %581 = vmatprep.subr.bf16.mxu0 0
        %582 = vmatpush1.bf16.msra.mxu0 0
        %583 = vmatprep.subr.bf16.mxu0 0
        %584 = vmatpush1.bf16.msra.mxu0 0
        %585 = vmatprep.subr.bf16.mxu0 0
        %586 = vmatpush1.bf16.msra.mxu0 0
        %587 = vmatprep.subr.bf16.mxu0 0
        %588 = vmatpush1.bf16.msra.mxu0 0
        %589 = vmatprep.subr.bf16.mxu0 0
        %590 = vmatpush1.bf16.msra.mxu0 0
        %591 = vmatprep.subr.bf16.mxu0 0
        %592 = vmatpush1.bf16.msra.mxu0 0
        %593 = vmatprep.subr.bf16.mxu0 0
        %594 = vmatpush1.bf16.msra.mxu0 0
        %595 = vmatprep.subr.bf16.mxu0 0
        %596 = vmatpush1.bf16.msra.mxu0 0
        %597 = vmatprep.subr.bf16.mxu0 0
        %598 = vmatpush1.bf16.msra.mxu0 0
        %599 = vmatprep.subr.bf16.mxu0 0
        %600 = vmatpush1.bf16.msra.mxu0 0
        %601 = vmatprep.subr.bf16.mxu0 0
        %602 = vmatpush1.bf16.msra.mxu0 0
        %603 = vmatprep.subr.bf16.mxu0 0
        %604 = vmatpush1.bf16.msra.mxu0 0
        %605 = vmatprep.subr.bf16.mxu0 0
        %606 = vmatpush1.bf16.msra.mxu0 0
        %607 = vmatprep.subr.bf16.mxu0 0
        %608 = vmatpush1.bf16.msra.mxu0 0
        %609 = vmatprep.mubr.bf16.mxu0 0
        %610 = vmatmul.mubr.bf16.gmra.mrb[0].mxu0 %v575
        %v611 = vpop.f32.mrb[0].mxu0
        %v612 = vadd.f32 0.0, %v611
        %v613 = vpop.f32.mrb[0].mxu0
        %v614 = vpop.f32.mrb[0].mxu0
        %v615 = vpop.f32.mrb[0].mxu0
        %616 = vdwg.mxu0
        %v617 = vpack.c.bf16 %v612, %v612
        %s618 = scalar_lea.vmem [#allocation3], 128
        %v619 = vld [vmem:[%s618] sm:$0xff]
        %v620 = vld [vmem:[%s618 + $0x8] sm:$0xff]
        %v621 = vld [vmem:[%s618 + $0x10] sm:$0xff]
        %v622 = vld [vmem:[%s618 + $0x18] sm:$0xff]
        %v623 = vld [vmem:[%s618 + $0x20] sm:$0xff]
        %v624 = vld [vmem:[%s618 + $0x28] sm:$0xff]
        %v625 = vld [vmem:[%s618 + $0x30] sm:$0xff]
        %v626 = vld [vmem:[%s618 + $0x38] sm:$0xff]
        %v635 = vunpack.c.l.b16 %v619
        %v636 = vunpack.c.h.b16 %v619
        %v637 = vunpack.c.l.b16 %v620
        %v638 = vunpack.c.h.b16 %v620
        %v639 = vunpack.c.l.b16 %v621
        %v640 = vunpack.c.h.b16 %v621
        %v641 = vunpack.c.l.b16 %v622
        %v642 = vunpack.c.h.b16 %v622
        %v643 = vunpack.c.l.b16 %v623
        %v644 = vunpack.c.h.b16 %v623
        %v645 = vunpack.c.l.b16 %v624
        %v646 = vunpack.c.h.b16 %v624
        %v647 = vunpack.c.l.b16 %v625
        %v648 = vunpack.c.h.b16 %v625
        %v649 = vunpack.c.l.b16 %v626
        %v650 = vunpack.c.h.b16 %v626
        %v651 = vpack.c.b16 %v637, %v635
        %v652 = vpack.c.b16 %v638, %v636
        %v653 = vpack.c.b16 %v641, %v639
        %v654 = vpack.c.b16 %v642, %v640
        %v655 = vpack.c.b16 %v645, %v643
        %v656 = vpack.c.b16 %v646, %v644
        %v657 = vpack.c.b16 %v649, %v647
        %v658 = vpack.c.b16 %v650, %v648
        %v668 = vsel %vm442, %v617, 0
        %670 = vmatprep.subr.bf16.mxu0 %v652
        %671 = vmatpush1.bf16.msra.mxu0 %v651
        %672 = vmatprep.subr.bf16.mxu0 %v654
        %673 = vmatpush1.bf16.msra.mxu0 %v653
        %674 = vmatprep.subr.bf16.mxu0 %v656
        %675 = vmatpush1.bf16.msra.mxu0 %v655
        %676 = vmatprep.subr.bf16.mxu0 %v658
        %677 = vmatpush1.bf16.msra.mxu0 %v657
        %678 = vmatprep.subr.bf16.mxu0 0
        %679 = vmatpush1.bf16.msra.mxu0 0
        %680 = vmatprep.subr.bf16.mxu0 0
        %681 = vmatpush1.bf16.msra.mxu0 0
        %682 = vmatprep.subr.bf16.mxu0 0
        %683 = vmatpush1.bf16.msra.mxu0 0
        %684 = vmatprep.subr.bf16.mxu0 0
        %685 = vmatpush1.bf16.msra.mxu0 0
        %686 = vmatprep.subr.bf16.mxu0 0
        %687 = vmatpush1.bf16.msra.mxu0 0
        %688 = vmatprep.subr.bf16.mxu0 0
        %689 = vmatpush1.bf16.msra.mxu0 0
        %690 = vmatprep.subr.bf16.mxu0 0
        %691 = vmatpush1.bf16.msra.mxu0 0
        %692 = vmatprep.subr.bf16.mxu0 0
        %693 = vmatpush1.bf16.msra.mxu0 0
        %694 = vmatprep.subr.bf16.mxu0 0
        %695 = vmatpush1.bf16.msra.mxu0 0
        %696 = vmatprep.subr.bf16.mxu0 0
        %697 = vmatpush1.bf16.msra.mxu0 0
        %698 = vmatprep.subr.bf16.mxu0 0
        %699 = vmatpush1.bf16.msra.mxu0 0
        %700 = vmatprep.subr.bf16.mxu0 0
        %701 = vmatpush1.bf16.msra.mxu0 0
        %702 = vmatprep.mubr.bf16.mxu0 0
        %703 = vmatmul.mubr.bf16.gmra.mrb[0].mxu0 %v668
        %v704 = vpop.f32.mrb[0].mxu0
        %v705 = vadd.f32 0.0, %v704
        %v706 = vpop.f32.mrb[0].mxu0
        %v707 = vadd.f32 0.0, %v706
        %v708 = vpop.f32.mrb[0].mxu0
        %v709 = vpop.f32.mrb[0].mxu0
        %710 = vdwg.mxu0
        %v711 = vadd.f32 %v565, %v705
        %v712 = vadd.f32 %v567, %v707
        %v713 = vld [vmem:[%s3] sm:$0x3]
        %v715 = vlaneseq
        %v716 = vshrl.u32 %v715, 7
        %v717 = vsub.s32 0, %v716
        %v718 = vrot.slane %v713, %v717
        %v719 = vlaneseq
        %v720 = vshrl.u32 %v719, 7
        %v721 = vsub.s32 1, %v720
        %v722 = vrot.slane %v713, %v721
        %v725 = vadd.f32 %v711, %v718
        %v726 = vadd.f32 %v712, %v722
        %vm727 = vcmp.ge.f32.partialorder %v725, 0.0
        %vm728 = vcmp.ge.f32.partialorder %v726, 0.0
        %v729 = vmul.f32 %v725, 0.01
        %v730 = vmul.f32 %v726, 0.01
        %v731 = vsel %vm727, %v725, %v729
        %v732 = vsel %vm728, %v726, %v730
        %733 = vst [vmem:[%s281] sm:$0xff] %v731
        %734 = vst [vmem:[%s281 + $0x8] sm:$0xff] %v732
        %s735 = sand.u32 %s135, 1
        %s736 = scalar_lea.sflag [#allocation5], %s735
        %s737 = sand.u32 %s135, 1
        %s738 = smul.addr %s737, 16
        %s739 = scalar_lea.vmem [#allocation6], %s738
        // Predicated region
        $region79: #{tpu_custom_call.1} parent=69 // pred_check
          %p740 = pneg %p145
        $region80: #{tpu_custom_call.1} parent=69 // pred_check_branch
          %742 = sbr.rel (%p740) target = $region82
        $region81: #{tpu_custom_call.1} parent=69 // pred_region
          %s744 = ssub.s32 256, 256
          %745 = vsyncadd %s736, %s744
          %s746 = smul.addr %s24, 2
          %s747 = smul.addr %s23, 8
          %s748 = sadd.s32 %s746, %s747
          %s749 = smul.addr %s748, 128
          %s750 = scalar_lea.hbm %s4, %s749
          %s752 = sshll.u32 %s739, 4
          %s753 = int_to_ptr.vmem [resolvable:$true] %s752
          %755 = dma.vmem_to_hbm [thread:$0]  %s753, 256, %s750, %s736
        $region82: #{tpu_custom_call.1} parent=69 // pred_fallthru
          _
      $region70: #{tpu_custom_call.1} parent=5 // pred_fallthru
        _
      %p756 = scmp.le.s32.totalorder 2, %s14
      // Predicated region
      $region83: #{tpu_custom_call.1} parent=5 // pred_check
        %p757 = pneg %p756
      $region84: #{tpu_custom_call.1} parent=5 // pred_check_branch
        %759 = sbr.rel (%p757) target = $region86
      $region85: #{tpu_custom_call.1} parent=5 // pred_region
        %s760 = ssub.s32 %s14, 2
        // Predicated region
        $region87: #{tpu_custom_call.1} parent=85 // pred_check
          %p761 = pneg %p151
        $region88: #{tpu_custom_call.1} parent=85 // pred_check_branch
          %763 = sbr.rel (%p761) target = $region90
        $region89: #{tpu_custom_call.1} parent=85 // pred_region
          %s764 = sand.u32 %s136, 1
          %s765 = scalar_lea.sflag [#allocation5], %s764
          %s766 = sand.u32 %s136, 1
          %s767 = smul.addr %s766, 16
          %s768 = scalar_lea.vmem [#allocation6], %s767
          %769 = dma.done %s765, 256
        $region90: #{tpu_custom_call.1} parent=85 // pred_fallthru
          _
      $region86: #{tpu_custom_call.1} parent=5 // pred_fallthru
        _
    $region6: #{tpu_custom_call.1} parent=1 // loop_footer
      %s18 = sadd.s32 1, %s14
    $region7: #{tpu_custom_call.1} parent=1 // loop_footer_branch
      %13 = sbr.rel target = $region3
    $region8: #{tpu_custom_call.1} parent=1 // loop_exit
      _
    %770 = vsyncpa [#allocation4], 1
    %s771 = scalar_lea.sflag [#allocation4], 1
    %772 = vsyncpa %s771, 1
    %773 = vsyncpa [#allocation5], 1
    %s774 = scalar_lea.sflag [#allocation5], 1
    %775 = vsyncpa %s774, 1

</llo_original>
